<compile_context>
chip_gen: v5e
topology: v5e:2x2
jax: 0.10.0
libtpu: 0.0.40
codegen_flags: <defaults>
</compile_context>

<pallas_src>
import math

import jax
import jax.numpy as jnp
from jax import lax
from jax.experimental import pallas as pl
from jax.experimental.pallas import tpu as pltpu

CIN, COUT, K, STRIDE = 139, 64, 3, 2
KDIM = 4 * CIN                                   # fused contraction dim (556)
KPAD = ((KDIM + 127) // 128) * 128               # lane-aligned contraction (640)
NOUT = 4 * COUT                                  # fused output width (256)


def _kernel(lhs_ref, w_ref, b_ref, o_ref):
    # Single MXU matmul over the fused contraction, f32 accumulation,
    # then one bias/tanh^2 pass over the lane-dense (rows, 256) tile.
    p = jnp.dot(lhs_ref[...], w_ref[...], preferred_element_type=jnp.float32)
    t = jnp.tanh(p + b_ref[...])
    o_ref[...] = (t * t).astype(o_ref.dtype)


def conv_transpose_tanh_sq(x_nchw, weight, bias):
    """tanh(ConvTranspose2d(139->64, k=3, s=2, p=0)(x))**2, NCHW in/out."""
    n, cin, h, w = x_nchw.shape
    assert cin == CIN
    oh = (h - 1) * STRIDE + K
    ow = (w - 1) * STRIDE + K
    A, B = h + 1, w + 1                 # parity-plane grid; 2A x 2B covers oh x ow
    m = A * B                           # rows per batch element
    m_pad = ((m + 15) // 16) * 16       # bf16 packs 16 rows per sublane vreg

    # ---- wrapper glue (tiny fused XLA ops): shifted-tap LHS ------------------
    x_nhwc = jnp.transpose(x_nchw, (0, 2, 3, 1)).astype(jnp.bfloat16)
    x_pad = jnp.pad(x_nhwc, ((0, 0), (1, 1), (1, 1), (0, 0)))
    # four shifted views of x (zero halo handles the borders):
    v0 = x_pad[:, 1:1 + A, 1:1 + B, :]   # x[a,   b  ]
    v1 = x_pad[:, 0:A,     1:1 + B, :]   # x[a-1, b  ]
    v2 = x_pad[:, 1:1 + A, 0:B,     :]   # x[a,   b-1]
    v3 = x_pad[:, 0:A,     0:B,     :]   # x[a-1, b-1]
    lhs = jnp.concatenate([v0, v1, v2, v3], axis=-1).reshape(n, m, KDIM)
    lhs = jnp.pad(lhs, ((0, 0), (0, m_pad - m), (0, KPAD - KDIM)))

    # ---- fused block-structured RHS (KPAD, 4*COUT) ---------------------------
    # Row blocks follow the LHS tap order; column blocks are ee / eo / oe / oo:
    #   out[2a,  2b  ] = v0*W00 + v1*W20 + v2*W02 + v3*W22
    #   out[2a,  2b+1] = v0*W01 + v1*W21
    #   out[2a+1,2b  ] = v0*W10 + v2*W12
    #   out[2a+1,2b+1] = v0*W11
    w_t = jnp.transpose(weight, (2, 3, 0, 1)).astype(jnp.bfloat16)  # (kh,kw,CIN,COUT)
    z = jnp.zeros((CIN, COUT), jnp.bfloat16)
    col_ee = jnp.concatenate([w_t[0, 0], w_t[2, 0], w_t[0, 2], w_t[2, 2]], axis=0)
    col_eo = jnp.concatenate([w_t[0, 1], w_t[2, 1], z, z], axis=0)
    col_oe = jnp.concatenate([w_t[1, 0], z, w_t[1, 2], z], axis=0)
    col_oo = jnp.concatenate([w_t[1, 1], z, z, z], axis=0)
    w_all = jnp.concatenate([col_ee, col_eo, col_oe, col_oo], axis=1)   # (KDIM, 256)
    w_all = jnp.pad(w_all, ((0, KPAD - KDIM), (0, 0)))                  # (KPAD, 256)
    b_all = jnp.tile(bias.astype(jnp.float32), 4).reshape(1, NOUT)      # (1, 256)

    # ---- fold batch into M; <=2 chunks (one per v7x TensorCore) --------------
    num_chunks = 2 if n >= 2 else 1
    bpc = -(-n // num_chunks)                       # batches per chunk
    rows_per_chunk = bpc * m_pad                    # multiple of 16
    total_rows = num_chunks * rows_per_chunk
    lhs_flat = lhs.reshape(n * m_pad, KPAD)
    lhs_flat = jnp.pad(lhs_flat, ((0, total_rows - n * m_pad), (0, 0)))

    out_flat = pl.pallas_call(
        _kernel,
        out_shape=jax.ShapeDtypeStruct((total_rows, NOUT), jnp.float32),
        grid_spec=pltpu.PrefetchScalarGridSpec(
            num_scalar_prefetch=0,
            grid=(num_chunks,),
            in_specs=[
                pl.BlockSpec((rows_per_chunk, KPAD), lambda c: (c, 0)),
                pl.BlockSpec((KPAD, NOUT), lambda c: (0, 0)),
                pl.BlockSpec((1, NOUT), lambda c: (0, 0)),
            ],
            out_specs=pl.BlockSpec((rows_per_chunk, NOUT), lambda c: (c, 0)),
        ),
        compiler_params=pltpu.CompilerParams(
            dimension_semantics=("parallel",)),
    )(lhs_flat, w_all, b_all)

    # ---- de-interleave parity planes -> NCHW, crop (fused XLA transpose) -----
    planes = out_flat[: n * m_pad].reshape(n, m_pad, 2, 2, COUT)[:, :m]
    planes = planes.reshape(n, A, B, 2, 2, COUT)
    y = jnp.transpose(planes, (0, 5, 1, 3, 2, 4)).reshape(n, COUT, 2 * A, 2 * B)
    return y[:, :, :oh, :ow]


def _reference(x_nchw, weight, bias):
    """Pure-JAX f32 reference (XLA conv, HIGHEST precision) for verification."""
    x = jnp.transpose(x_nchw, (0, 2, 3, 1)).astype(jnp.float32)
    w_eq = jnp.transpose(weight, (2, 3, 0, 1))[::-1, ::-1].astype(jnp.float32)
    y = lax.conv_general_dilated(
        x, w_eq, window_strides=(1, 1),
        padding=((K - 1, K - 1), (K - 1, K - 1)),
        lhs_dilation=(STRIDE, STRIDE),
        dimension_numbers=('NHWC', 'HWIO', 'NHWC'),
        precision=lax.Precision.HIGHEST)
    y = y + bias.reshape(1, 1, 1, COUT)
    t = jnp.tanh(y)
    return jnp.transpose(t * t, (0, 3, 1, 2))


if __name__ == "__main__":
    key = jax.random.PRNGKey(0)
    k_w, k_b, k_x = jax.random.split(key, 3)

    # deterministic parameter init (PyTorch-style uniform bound)
    fan_in = CIN * K * K
    bound = 1.0 / math.sqrt(fan_in)
    weight = jax.random.uniform(k_w, (CIN, COUT, K, K),
                                minval=-bound, maxval=bound, dtype=jnp.float32)
    bias = jax.random.uniform(k_b, (COUT,), minval=-bound, maxval=bound,
                              dtype=jnp.float32)

    # small input consistent with the module: (batch=2, 139, 9, 9)
    x = jax.random.normal(k_x, (2, CIN, 9, 9), dtype=jnp.float32)

    fn = jax.jit(conv_transpose_tanh_sq)
    out = jax.block_until_ready(fn(x, weight, bias))
    ref = jax.block_until_ready(_reference(x, weight, bias))

    assert out.shape == (2, COUT, 19, 19), out.shape
    max_err = float(jnp.max(jnp.abs(out - ref)))
    # bf16 activations/weights with f32 accumulation vs f32 reference
    assert max_err < 1e-2, max_err

    print("KERNEL_OK")
</pallas_src>

<mosaic_0001>
module attributes {stable_mosaic.version = 11 : i64} {
  func.func @_kernel(%arg0: i32, %arg1: memref<112x640xbf16, #tpu.memory_space<vmem>>, %arg2: memref<640x256xbf16, #tpu.memory_space<vmem>>, %arg3: memref<1x256xf32, #tpu.memory_space<vmem>>, %arg4: memref<112x256xf32, #tpu.memory_space<vmem>>) attributes {dimension_semantics = [#tpu.dimension_semantics<parallel>], iteration_bounds = array<i64: 2>, scalar_prefetch = 0 : i64, scratch_operands = 0 : i64, tpu.core_type = #tpu.core_type<tc>, window_params = [{transform_indices = @transform_0, window_bounds = array<i64: 112, 640>}, {pipeline_mode = #tpu.pipeline_mode<synchronous>, transform_indices = @transform_1, window_bounds = array<i64: 640, 256>}, {pipeline_mode = #tpu.pipeline_mode<synchronous>, transform_indices = @transform_2, window_bounds = array<i64: 1, 256>}, {transform_indices = @transform_3, window_bounds = array<i64: 112, 256>}]} {
    %c0 = arith.constant 0 : index
    %c0_0 = arith.constant 0 : index
    %0 = vector.load %arg1[%c0, %c0_0] : memref<112x640xbf16, #tpu.memory_space<vmem>>, vector<112x640xbf16>
    %c0_1 = arith.constant 0 : index
    %c0_2 = arith.constant 0 : index
    %1 = vector.load %arg2[%c0_1, %c0_2] : memref<640x256xbf16, #tpu.memory_space<vmem>>, vector<640x256xbf16>
    %cst = arith.constant dense<0.000000e+00> : vector<112x256xf32>
    %2 = tpu.matmul %0, %1, %cst {dimension_numbers = #tpu.dot_dimension_numbers<[1], [0], [0], [1], [0, 0, 1, 1], [], []>} : vector<112x640xbf16>, vector<640x256xbf16>, vector<112x256xf32> -> vector<112x256xf32>
    %c0_3 = arith.constant 0 : index
    %c0_4 = arith.constant 0 : index
    %3 = vector.load %arg3[%c0_3, %c0_4] : memref<1x256xf32, #tpu.memory_space<vmem>>, vector<1x256xf32>
    %4 = vector.broadcast %3 : vector<1x256xf32> to vector<112x256xf32>
    %5 = arith.addf %2, %4 : vector<112x256xf32>
    %6 = math.tanh %5 : vector<112x256xf32>
    %7 = arith.mulf %6, %6 : vector<112x256xf32>
    %c0_5 = arith.constant 0 : index
    %c0_6 = arith.constant 0 : index
    %8 = vector.load %arg4[%c0_5, %c0_6] : memref<112x256xf32, #tpu.memory_space<vmem>>, vector<112x256xf32>
    tpu.vector_store %arg4[%c0_5, %c0_6], %7 {strides = array<i32>} : memref<112x256xf32, #tpu.memory_space<vmem>>, vector<112x256xf32>,
    return
  }
  func.func @transform_0(%arg0: i32) -> (i32, i32) {
    %c0_i32 = arith.constant 0 : i32
    %c0_i32_0 = arith.constant 0 : i32
    return %arg0, %c0_i32 : i32, i32
  }
  func.func @transform_1(%arg0: i32) -> (i32, i32) {
    %c0_i32 = arith.constant 0 : i32
    %c0_i32_0 = arith.constant 0 : i32
    %c0_i32_1 = arith.constant 0 : i32
    return %c0_i32, %c0_i32_0 : i32, i32
  }
  func.func @transform_2(%arg0: i32) -> (i32, i32) {
    %c0_i32 = arith.constant 0 : i32
    %c0_i32_0 = arith.constant 0 : i32
    %c0_i32_1 = arith.constant 0 : i32
    return %c0_i32, %c0_i32_0 : i32, i32
  }
  func.func @transform_3(%arg0: i32) -> (i32, i32) {
    %c0_i32 = arith.constant 0 : i32
    %c0_i32_0 = arith.constant 0 : i32
    return %arg0, %c0_i32 : i32, i32
  }
}

</mosaic_0001>

<llo_original>
// kernel: tile.8
$region0: #{tile.8}
  #allocation0 [shape = 's32[1]{0}', space=sflag, size = 0x4, scoped, tag = 'scoped memory for tile.8']
  %s0 = inlined_call_operand.vmem [shape: f32[64], index: 0, kind: input, shape index: {}]
  %s1 = inlined_call_operand.vmem [shape: f32[4,64], index: 1, kind: output, shape index: {}]
  // Predicated region
  $region2: #{tile.8} parent=0 // pred_check
    _
  $region3: #{tile.8} parent=0 // pred_check_branch
    %3 = sbr.rel (0) target = $region5
  $region4: #{tile.8} parent=0 // pred_region
    _
  $region5: #{tile.8} parent=0 // pred_fallthru
    _
  %v4 = vld [vmem:[%s0] ss:$0 sm:$0xff]
  %5 = vst [vmem:[%s1] sm:$0xf] %v4

// kernel: tile.9
$region0: #{tile.9}
  %s0 = inlined_call_operand.vmem [shape: f32[4,64], index: 0, kind: input, shape index: {}]
  %s1 = inlined_call_operand.vmem [shape: f32[1,256], index: 1, kind: output, shape index: {}]
  $region1: #{tile.9} parent=0
    #allocation0 [shape = 'u8[8192]{0}', space=vmem, size = 0x2000, scoped, tag = 'scoped mem for output reshape']
    #allocation1 [shape = 'u8[4096]{0}', space=vmem, size = 0x1000, scoped, tag = 'scoped mem for input reshape']
    %s3 = ssub.s32 16, 1
    %v4 = vld [vmem:[%s0] sm:%s3]
    %5 = vst [vmem:[#allocation1] sm:%s3] %v4
    %s6 = smov 3
    %v7 = vld [vmem:[#allocation1] ss:$2 sm:%s6]
    %vm8 = vcmask 523264
    %9 = vst.msk [vmem:[#allocation0] ss:$8 sm:$0x3] %vm8, %v7
    %s10 = scalar_lea.vmem [#allocation1], 1
    %s11 = smov 3
    %v12 = vld [vmem:[%s10] ss:$2 sm:%s11]
    %13 = vrot.lane.b32.xlu0 %v12, 64
    %v14 = vpop.permute.xlu0 %13
    %vm15 = vcmask 1048064
    %16 = vst.msk [vmem:[#allocation0] ss:$8 sm:$0x3] %vm15, %v14
    %s18 = ssub.s32 2, 1
    %v19 = vld [vmem:[#allocation0] sm:%s18]
    %s21 = ssub.s32 2, 1
    %22 = vst [vmem:[%s1] sm:%s21] %v19
    %s23 = scalar_lea.vmem [#allocation0], 8
    %v24 = vld [vmem:[%s23] sm:%s18]
    %s26 = ssub.s32 2, 1
    %s27 = scalar_lea.vmem %s1, 1
    %28 = vst [vmem:[%s27] sm:%s26] %v24

// kernel: conv_transpose_tanh_sq.1
$region0: #{conv_transpose_tanh_sq.1}
  #allocation0 [shape = 'u32[]', space=smem, size = 0x4, offset = 0x4, fixed_abs, tag = 'smem constant byte address 0x4 - core index']
  #allocation1 [shape = 'u32[72,128]{1,0:T(1,128)}', space=vmem, size = 0x9000, scoped, tag = 'internal scratch']
  %s0 = inlined_call_operand.vmem [shape: bf16[224,640], index: 0, kind: input, shape index: {}]
  %s1 = inlined_call_operand.vmem [shape: bf16[640,256], index: 1, kind: input, shape index: {}]
  %s2 = inlined_call_operand.vmem [shape: f32[1,256], index: 2, kind: input, shape index: {}]
  %s3 = inlined_call_operand.vmem [shape: f32[224,256], index: 3, kind: output, shape index: {}]
  %s4 = sld [smem:[#allocation0]]
  $region45: #{conv_transpose_tanh_sq.1} parent=0
    _
  %s6 = ssub.s32 1, %s4
  %s7 = scalar_select 0, %s6, %s4
  loop: start=0, step=1, limit=4
  $region2: #{conv_transpose_tanh_sq.1} parent=0 // loop_pre_header
    _
  $region3: #{conv_transpose_tanh_sq.1} parent=0 // loop_header
    %s9 = sphi 0, %s13
    %p10 = scmp.ge.s32.totalorder %s9, 4
    %s19 = sphi 0, %s21
    %s22 = sphi 0, %s19
    %s23 = sphi 0, %s22
    %s39 = sphi 0, %s23
    %s43 = sphi 0, %s43
    %s45 = sphi 0, %s43
    %s46 = sphi 0, %s45
    %s60 = sphi 0, %s46
    %s64 = sphi 0, %s64
    %s66 = sphi 0, %s64
    %s67 = sphi 0, %s66
    %s81 = sphi 0, %s67
    %s87 = sphi 0, %s89
    %s90 = sphi 0, %s87
    %s91 = sphi 0, %s90
    %s107 = sphi 0, %s91
  $region4: #{conv_transpose_tanh_sq.1} parent=0 // loop_header_branch
    %12 = sbr.rel (%p10) target = $region8
  $region5: #{conv_transpose_tanh_sq.1} parent=0 // loop_body
    %s14 = ssub.s32 %s9, 1
    %s15 = ssub.s32 %s9, 2
    %s16 = sadd.s32 %s9, 1
    %s17 = ssub.s32 %s9, %s16
    %p18 = scmp.eq.s32.totalorder %s17, 0
    %s20 = sadd.s32 %s19, 1
    %s21 = scalar_select %p18, %s19, %s20
    %p24 = pneg %p18
    %p25 = scmp.eq.s32.totalorder %s9, 1
    %p26 = por %p24, %p25
    %p27 = scmp.ne.s32.totalorder %s19, %s22
    %p28 = scmp.eq.s32.totalorder %s9, 0
    %p29 = por %p27, %p28
    %p30 = scmp.ne.s32.totalorder %s19, %s22
    %p31 = scmp.eq.s32.totalorder %s14, 1
    %p32 = por %p30, %p31
    %p33 = scmp.ne.s32.totalorder %s22, %s23
    %p34 = scmp.eq.s32.totalorder %s14, 0
    %p35 = por %p33, %p34
    %p36 = scmp.ne.s32.totalorder %s22, %s23
    %p37 = scmp.eq.s32.totalorder %s15, 1
    %p38 = por %p36, %p37
    %p40 = scmp.ne.s32.totalorder %s23, %s39
    %p41 = scmp.eq.s32.totalorder %s15, 0
    %p42 = por %p40, %p41
    %s44 = sadd.s32 %s43, 1
    %p47 = scmp.eq.s32.totalorder %s9, 1
    %p48 = scmp.ne.s32.totalorder %s43, %s45
    %p49 = scmp.eq.s32.totalorder %s9, 0
    %p50 = por %p48, %p49
    %p51 = scmp.ne.s32.totalorder %s43, %s45
    %p52 = scmp.eq.s32.totalorder %s14, 1
    %p53 = por %p51, %p52
    %p54 = scmp.ne.s32.totalorder %s45, %s46
    %p55 = scmp.eq.s32.totalorder %s14, 0
    %p56 = por %p54, %p55
    %p57 = scmp.ne.s32.totalorder %s45, %s46
    %p58 = scmp.eq.s32.totalorder %s15, 1
    %p59 = por %p57, %p58
    %p61 = scmp.ne.s32.totalorder %s46, %s60
    %p62 = scmp.eq.s32.totalorder %s15, 0
    %p63 = por %p61, %p62
    %s65 = sadd.s32 %s64, 1
    %p68 = scmp.eq.s32.totalorder %s9, 1
    %p69 = scmp.ne.s32.totalorder %s64, %s66
    %p70 = scmp.eq.s32.totalorder %s9, 0
    %p71 = por %p69, %p70
    %p72 = scmp.ne.s32.totalorder %s64, %s66
    %p73 = scmp.eq.s32.totalorder %s14, 1
    %p74 = por %p72, %p73
    %p75 = scmp.ne.s32.totalorder %s66, %s67
    %p76 = scmp.eq.s32.totalorder %s14, 0
    %p77 = por %p75, %p76
    %p78 = scmp.ne.s32.totalorder %s66, %s67
    %p79 = scmp.eq.s32.totalorder %s15, 1
    %p80 = por %p78, %p79
    %p82 = scmp.ne.s32.totalorder %s67, %s81
    %p83 = scmp.eq.s32.totalorder %s15, 0
    %p84 = por %p82, %p83
    %s85 = ssub.s32 %s9, %s16
    %p86 = scmp.eq.s32.totalorder %s85, 0
    %s88 = sadd.s32 %s87, 1
    %s89 = scalar_select %p86, %s87, %s88
    %p92 = pneg %p86
    %p93 = scmp.eq.s32.totalorder %s9, 1
    %p94 = por %p92, %p93
    %p95 = scmp.ne.s32.totalorder %s87, %s90
    %p96 = scmp.eq.s32.totalorder %s9, 0
    %p97 = por %p95, %p96
    %p98 = scmp.ne.s32.totalorder %s87, %s90
    %p99 = scmp.eq.s32.totalorder %s14, 1
    %p100 = por %p98, %p99
    %p101 = scmp.ne.s32.totalorder %s90, %s91
    %p102 = scmp.eq.s32.totalorder %s14, 0
    %p103 = por %p101, %p102
    %p104 = scmp.ne.s32.totalorder %s90, %s91
    %p105 = scmp.eq.s32.totalorder %s15, 1
    %p106 = por %p104, %p105
    %p108 = scmp.ne.s32.totalorder %s91, %s107
    %p109 = scmp.eq.s32.totalorder %s15, 0
    %p110 = por %p108, %p109
    %p111 = scmp.le.s32.totalorder 1, %s9
    %p112 = scmp.lt.s32.totalorder %s9, 3
    %p113 = pnand %p111, %p112
    %p114 = pneg %p113
    // Predicated region
    $region9: #{conv_transpose_tanh_sq.1} parent=5 // pred_check
      _
    $region10: #{conv_transpose_tanh_sq.1} parent=5 // pred_check_branch
      %116 = sbr.rel (%p113) target = $region12
    $region11: #{conv_transpose_tanh_sq.1} parent=5 // pred_region
      %s117 = ssub.s32 %s9, 1
      // Predicated region
      $region13: #{conv_transpose_tanh_sq.1} parent=11 // pred_check
        %p118 = pneg %p56
      $region14: #{conv_transpose_tanh_sq.1} parent=11 // pred_check_branch
        %120 = sbr.rel (%p118) target = $region16
      $region15: #{conv_transpose_tanh_sq.1} parent=11 // pred_region
        _
      $region16: #{conv_transpose_tanh_sq.1} parent=11 // pred_fallthru
        _
      // Predicated region
      $region17: #{conv_transpose_tanh_sq.1} parent=11 // pred_check
        %p121 = pneg %p77
      $region18: #{conv_transpose_tanh_sq.1} parent=11 // pred_check_branch
        %123 = sbr.rel (%p121) target = $region20
      $region19: #{conv_transpose_tanh_sq.1} parent=11 // pred_region
        _
      $region20: #{conv_transpose_tanh_sq.1} parent=11 // pred_fallthru
        _
    $region12: #{conv_transpose_tanh_sq.1} parent=5 // pred_fallthru
      _
    %p124 = scmp.lt.s32.totalorder %s9, 2
    // Predicated region
    $region21: #{conv_transpose_tanh_sq.1} parent=5 // pred_check
      %p125 = pneg %p124
    $region22: #{conv_transpose_tanh_sq.1} parent=5 // pred_check_branch
      %127 = sbr.rel (%p125) target = $region24
    $region23: #{conv_transpose_tanh_sq.1} parent=5 // pred_region
      // Predicated region
      $region25: #{conv_transpose_tanh_sq.1} parent=23 // pred_check
        %p128 = pneg %p29
      $region26: #{conv_transpose_tanh_sq.1} parent=23 // pred_check_branch
        %130 = sbr.rel (%p128) target = $region28
      $region27: #{conv_transpose_tanh_sq.1} parent=23 // pred_region
        %s131 = smul.u32 14, %s9
        %p132 = scmp.lt.s32.totalorder %s131, 27
        %s133 = scalar_select %p132, %s131, 27
        %s134 = smul.addr %s133, 5
        %s135 = smul.addr %s134, 4
        %s136 = scalar_lea.vmem %s0, %s135
        %s137 = smul.u32 14, %s9
      $region28: #{conv_transpose_tanh_sq.1} parent=23 // pred_fallthru
        _
    $region24: #{conv_transpose_tanh_sq.1} parent=5 // pred_fallthru
      _
    %p138 = scmp.le.s32.totalorder 1, %s9
    %p139 = scmp.lt.s32.totalorder %s9, 3
    %p140 = pnand %p138, %p139
    %p141 = pneg %p140
    // Predicated region
    $region29: #{conv_transpose_tanh_sq.1} parent=5 // pred_check
      _
    $region30: #{conv_transpose_tanh_sq.1} parent=5 // pred_check_branch
      %143 = sbr.rel (%p140) target = $region32
    $region31: #{conv_transpose_tanh_sq.1} parent=5 // pred_region
      %s144 = ssub.s32 %s9, 1
      %s145 = smul.u32 14, %s14
      %p146 = scmp.lt.s32.totalorder %s145, 27
      %s147 = scalar_select %p146, %s145, 27
      %s148 = smul.addr %s147, 5
      %s149 = smul.addr %s148, 4
      %s150 = scalar_lea.vmem %s0, %s149
      %p151 = pneg %p35
      %p152 = pneg %p32
      %p153 = pneg %p56
      %p154 = pneg %p53
      %p155 = pneg %p77
      %p156 = pneg %p74
      %p157 = pneg %p103
      %p158 = pneg %p100
      %s159 = smul.u32 14, %s14
      %p160 = scmp.lt.s32.totalorder %s159, 27
      %s161 = scalar_select %p160, %s159, 27
      %s162 = smul.addr %s161, 2
      %s163 = smul.addr %s162, 8
      %s164 = scalar_lea.vmem %s3, %s163
      %s165 = smul.u32 14, %s14
      %p166 = scmp.lt.s32.totalorder %s165, 27
      %s167 = scalar_select %p166, %s165, 27
      %s168 = smul.addr %s167, 5
      %s169 = smul.addr %s168, 4
      %s170 = scalar_lea.vmem %s0, %s169
      %s171 = smul.u32 14, %s14
      %s172 = smul.u32 14, %s14
      %p173 = scmp.lt.s32.totalorder %s172, 27
      %s174 = scalar_select %p173, %s172, 27
      %s175 = smul.addr %s174, 2
      %s176 = smul.addr %s175, 8
      %s177 = scalar_lea.vmem %s3, %s176
      %s178 = smul.u32 14, %s14
      %v179 = vld [vmem:[%s170] sm:$0xff]
      %v180 = vld [vmem:[%s170 + $0x8] sm:$0xff]
      %v181 = vld [vmem:[%s170 + $0x10] sm:$0xf]
      %v182 = vld [vmem:[%s170 + $0x14] sm:$0xff]
      %v183 = vld [vmem:[%s170 + $0x1c] sm:$0xff]
      %v184 = vld [vmem:[%s170 + $0x24] sm:$0xf]
      %v185 = vld [vmem:[%s170 + $0x28] sm:$0xff]
      %v186 = vld [vmem:[%s170 + $0x30] sm:$0xff]
      %v187 = vld [vmem:[%s170 + $0x38] sm:$0xf]
      %v188 = vld [vmem:[%s170 + $0x3c] sm:$0xff]
      %v189 = vld [vmem:[%s170 + $0x44] sm:$0xff]
      %v190 = vld [vmem:[%s170 + $0x4c] sm:$0xf]
      %v191 = vld [vmem:[%s170 + $0x50] sm:$0xff]
      %v192 = vld [vmem:[%s170 + $0x58] sm:$0xff]
      %v193 = vld [vmem:[%s170 + $0x60] sm:$0xf]
      %v194 = vld [vmem:[%s170 + $0x64] sm:$0xff]
      %v195 = vld [vmem:[%s170 + $0x6c] sm:$0xff]
      %v196 = vld [vmem:[%s170 + $0x74] sm:$0xf]
      %v197 = vld [vmem:[%s170 + $0x78] sm:$0xff]
      %v198 = vld [vmem:[%s170 + $0x80] sm:$0xff]
      %v199 = vld [vmem:[%s170 + $0x88] sm:$0xf]
      %v200 = vld [vmem:[%s170 + $0x8c] sm:$0xff]
      %v201 = vld [vmem:[%s170 + $0x94] sm:$0xff]
      %v202 = vld [vmem:[%s170 + $0x9c] sm:$0xf]
      %v203 = vld [vmem:[%s170 + $0xa0] sm:$0xff]
      %v204 = vld [vmem:[%s170 + $0xa8] sm:$0xff]
      %v205 = vld [vmem:[%s170 + $0xb0] sm:$0xf]
      %v206 = vld [vmem:[%s170 + $0xb4] sm:$0xff]
      %v207 = vld [vmem:[%s170 + $0xbc] sm:$0xff]
      %v208 = vld [vmem:[%s170 + $0xc4] sm:$0xf]
      %v209 = vld [vmem:[%s170 + $0xc8] sm:$0xff]
      %v210 = vld [vmem:[%s170 + $0xd0] sm:$0xff]
      %v211 = vld [vmem:[%s170 + $0xd8] sm:$0xf]
      %v212 = vld [vmem:[%s170 + $0xdc] sm:$0xff]
      %v213 = vld [vmem:[%s170 + $0xe4] sm:$0xff]
      %v214 = vld [vmem:[%s170 + $0xec] sm:$0xf]
      %v215 = vld [vmem:[%s170 + $0xf0] sm:$0xff]
      %v216 = vld [vmem:[%s170 + $0xf8] sm:$0xff]
      %v217 = vld [vmem:[%s170 + $0x100] sm:$0xf]
      %v218 = vld [vmem:[%s170 + $0x104] sm:$0xff]
      %v219 = vld [vmem:[%s170 + $0x10c] sm:$0xff]
      %v220 = vld [vmem:[%s170 + $0x114] sm:$0xf]
      %v221 = vld [vmem:[%s1] sm:$0xff]
      %v222 = vld [vmem:[%s1 + $0x8] sm:$0xff]
      %v223 = vld [vmem:[%s1 + $0x10] sm:$0xff]
      %v224 = vld [vmem:[%s1 + $0x18] sm:$0xff]
      %v225 = vld [vmem:[%s1 + $0x20] sm:$0xff]
      %v226 = vld [vmem:[%s1 + $0x28] sm:$0xff]
      %v227 = vld [vmem:[%s1 + $0x30] sm:$0xff]
      %v228 = vld [vmem:[%s1 + $0x38] sm:$0xff]
      %v229 = vld [vmem:[%s1 + $0x40] sm:$0xff]
      %v230 = vld [vmem:[%s1 + $0x48] sm:$0xff]
      %v231 = vld [vmem:[%s1 + $0x50] sm:$0xff]
      %v232 = vld [vmem:[%s1 + $0x58] sm:$0xff]
      %v233 = vld [vmem:[%s1 + $0x60] sm:$0xff]
      %v234 = vld [vmem:[%s1 + $0x68] sm:$0xff]
      %v235 = vld [vmem:[%s1 + $0x70] sm:$0xff]
      %v236 = vld [vmem:[%s1 + $0x78] sm:$0xff]
      %v237 = vld [vmem:[%s1 + $0x80] sm:$0xff]
      %v238 = vld [vmem:[%s1 + $0x88] sm:$0xff]
      %v239 = vld [vmem:[%s1 + $0x90] sm:$0xff]
      %v240 = vld [vmem:[%s1 + $0x98] sm:$0xff]
      %v241 = vld [vmem:[%s1 + $0xa0] sm:$0xff]
      %v242 = vld [vmem:[%s1 + $0xa8] sm:$0xff]
      %v243 = vld [vmem:[%s1 + $0xb0] sm:$0xff]
      %v244 = vld [vmem:[%s1 + $0xb8] sm:$0xff]
      %v245 = vld [vmem:[%s1 + $0xc0] sm:$0xff]
      %v246 = vld [vmem:[%s1 + $0xc8] sm:$0xff]
      %v247 = vld [vmem:[%s1 + $0xd0] sm:$0xff]
      %v248 = vld [vmem:[%s1 + $0xd8] sm:$0xff]
      %v249 = vld [vmem:[%s1 + $0xe0] sm:$0xff]
      %v250 = vld [vmem:[%s1 + $0xe8] sm:$0xff]
      %v251 = vld [vmem:[%s1 + $0xf0] sm:$0xff]
      %v252 = vld [vmem:[%s1 + $0xf8] sm:$0xff]
      %v253 = vld [vmem:[%s1 + $0x100] sm:$0xff]
      %v254 = vld [vmem:[%s1 + $0x108] sm:$0xff]
      %v255 = vld [vmem:[%s1 + $0x110] sm:$0xff]
      %v256 = vld [vmem:[%s1 + $0x118] sm:$0xff]
      %v257 = vld [vmem:[%s1 + $0x120] sm:$0xff]
      %v258 = vld [vmem:[%s1 + $0x128] sm:$0xff]
      %v259 = vld [vmem:[%s1 + $0x130] sm:$0xff]
      %v260 = vld [vmem:[%s1 + $0x138] sm:$0xff]
      %v261 = vld [vmem:[%s1 + $0x140] sm:$0xff]
      %v262 = vld [vmem:[%s1 + $0x148] sm:$0xff]
      %v263 = vld [vmem:[%s1 + $0x150] sm:$0xff]
      %v264 = vld [vmem:[%s1 + $0x158] sm:$0xff]
      %v265 = vld [vmem:[%s1 + $0x160] sm:$0xff]
      %v266 = vld [vmem:[%s1 + $0x168] sm:$0xff]
      %v267 = vld [vmem:[%s1 + $0x170] sm:$0xff]
      %v268 = vld [vmem:[%s1 + $0x178] sm:$0xff]
      %v269 = vld [vmem:[%s1 + $0x180] sm:$0xff]
      %v270 = vld [vmem:[%s1 + $0x188] sm:$0xff]
      %v271 = vld [vmem:[%s1 + $0x190] sm:$0xff]
      %v272 = vld [vmem:[%s1 + $0x198] sm:$0xff]
      %v273 = vld [vmem:[%s1 + $0x1a0] sm:$0xff]
      %v274 = vld [vmem:[%s1 + $0x1a8] sm:$0xff]
      %v275 = vld [vmem:[%s1 + $0x1b0] sm:$0xff]
      %v276 = vld [vmem:[%s1 + $0x1b8] sm:$0xff]
      %v277 = vld [vmem:[%s1 + $0x1c0] sm:$0xff]
      %v278 = vld [vmem:[%s1 + $0x1c8] sm:$0xff]
      %v279 = vld [vmem:[%s1 + $0x1d0] sm:$0xff]
      %v280 = vld [vmem:[%s1 + $0x1d8] sm:$0xff]
      %v281 = vld [vmem:[%s1 + $0x1e0] sm:$0xff]
      %v282 = vld [vmem:[%s1 + $0x1e8] sm:$0xff]
      %v283 = vld [vmem:[%s1 + $0x1f0] sm:$0xff]
      %v284 = vld [vmem:[%s1 + $0x1f8] sm:$0xff]
      %v285 = vld [vmem:[%s1 + $0x200] sm:$0xff]
      %v286 = vld [vmem:[%s1 + $0x208] sm:$0xff]
      %v287 = vld [vmem:[%s1 + $0x210] sm:$0xff]
      %v288 = vld [vmem:[%s1 + $0x218] sm:$0xff]
      %v289 = vld [vmem:[%s1 + $0x220] sm:$0xff]
      %v290 = vld [vmem:[%s1 + $0x228] sm:$0xff]
      %v291 = vld [vmem:[%s1 + $0x230] sm:$0xff]
      %v292 = vld [vmem:[%s1 + $0x238] sm:$0xff]
      %v293 = vld [vmem:[%s1 + $0x240] sm:$0xff]
      %v294 = vld [vmem:[%s1 + $0x248] sm:$0xff]
      %v295 = vld [vmem:[%s1 + $0x250] sm:$0xff]
      %v296 = vld [vmem:[%s1 + $0x258] sm:$0xff]
      %v297 = vld [vmem:[%s1 + $0x260] sm:$0xff]
      %v298 = vld [vmem:[%s1 + $0x268] sm:$0xff]
      %v299 = vld [vmem:[%s1 + $0x270] sm:$0xff]
      %v300 = vld [vmem:[%s1 + $0x278] sm:$0xff]
      %v301 = vld [vmem:[%s2] sm:$0x3]
      %v303 = vperm.slane %v301, 0
      %v304 = vperm.slane %v301, 1
      %v349 = vunpack.c.l.b16 %v179
      %v350 = vunpack.c.h.b16 %v179
      %v351 = vunpack.c.l.b16 %v180
      %v352 = vunpack.c.h.b16 %v180
      %v353 = vunpack.c.l.b16 %v181
      %v354 = vunpack.c.l.b16 %v182
      %v355 = vunpack.c.h.b16 %v182
      %v356 = vunpack.c.l.b16 %v183
      %v357 = vunpack.c.h.b16 %v183
      %v358 = vunpack.c.l.b16 %v184
      %v359 = vunpack.c.l.b16 %v185
      %v360 = vunpack.c.h.b16 %v185
      %v361 = vunpack.c.l.b16 %v186
      %v362 = vunpack.c.h.b16 %v186
      %v363 = vunpack.c.l.b16 %v187
      %v364 = vunpack.c.l.b16 %v188
      %v365 = vunpack.c.h.b16 %v188
      %v366 = vunpack.c.l.b16 %v189
      %v367 = vunpack.c.h.b16 %v189
      %v368 = vunpack.c.l.b16 %v190
      %v369 = vunpack.c.l.b16 %v191
      %v370 = vunpack.c.h.b16 %v191
      %v371 = vunpack.c.l.b16 %v192
      %v372 = vunpack.c.h.b16 %v192
      %v373 = vunpack.c.l.b16 %v193
      %v374 = vunpack.c.l.b16 %v194
      %v375 = vunpack.c.h.b16 %v194
      %v376 = vunpack.c.l.b16 %v195
      %v377 = vunpack.c.h.b16 %v195
      %v378 = vunpack.c.l.b16 %v196
      %v379 = vunpack.c.l.b16 %v197
      %v380 = vunpack.c.h.b16 %v197
      %v381 = vunpack.c.l.b16 %v198
      %v382 = vunpack.c.h.b16 %v198
      %v383 = vunpack.c.l.b16 %v199
      %v384 = vunpack.c.l.b16 %v200
      %v385 = vunpack.c.h.b16 %v200
      %v386 = vunpack.c.l.b16 %v201
      %v387 = vunpack.c.h.b16 %v201
      %v388 = vunpack.c.l.b16 %v202
      %v389 = vunpack.c.l.b16 %v203
      %v390 = vunpack.c.h.b16 %v203
      %v391 = vunpack.c.l.b16 %v204
      %v392 = vunpack.c.h.b16 %v204
      %v393 = vunpack.c.l.b16 %v205
      %v394 = vunpack.c.l.b16 %v206
      %v395 = vunpack.c.h.b16 %v206
      %v396 = vunpack.c.l.b16 %v207
      %v397 = vunpack.c.h.b16 %v207
      %v398 = vunpack.c.l.b16 %v208
      %v399 = vunpack.c.l.b16 %v209
      %v400 = vunpack.c.h.b16 %v209
      %v401 = vunpack.c.l.b16 %v210
      %v402 = vunpack.c.h.b16 %v210
      %v403 = vunpack.c.l.b16 %v211
      %v404 = vunpack.c.l.b16 %v212
      %v405 = vunpack.c.h.b16 %v212
      %v406 = vunpack.c.l.b16 %v213
      %v407 = vunpack.c.h.b16 %v213
      %v408 = vunpack.c.l.b16 %v214
      %v409 = vunpack.c.l.b16 %v215
      %v410 = vunpack.c.h.b16 %v215
      %v411 = vunpack.c.l.b16 %v216
      %v412 = vunpack.c.h.b16 %v216
      %v413 = vunpack.c.l.b16 %v217
      %v414 = vunpack.c.l.b16 %v218
      %v415 = vunpack.c.h.b16 %v218
      %v416 = vunpack.c.l.b16 %v219
      %v417 = vunpack.c.h.b16 %v219
      %v418 = vunpack.c.l.b16 %v220
      %v419 = vpack.c.b16 %v354, %v349
      %v420 = vpack.c.b16 %v355, %v350
      %v421 = vpack.c.b16 %v356, %v351
      %v422 = vpack.c.b16 %v357, %v352
      %v423 = vpack.c.b16 %v358, %v353
      %v424 = vpack.c.b16 %v364, %v359
      %v425 = vpack.c.b16 %v365, %v360
      %v426 = vpack.c.b16 %v366, %v361
      %v427 = vpack.c.b16 %v367, %v362
      %v428 = vpack.c.b16 %v368, %v363
      %v429 = vpack.c.b16 %v374, %v369
      %v430 = vpack.c.b16 %v375, %v370
      %v431 = vpack.c.b16 %v376, %v371
      %v432 = vpack.c.b16 %v377, %v372
      %v433 = vpack.c.b16 %v378, %v373
      %v434 = vpack.c.b16 %v384, %v379
      %v435 = vpack.c.b16 %v385, %v380
      %v436 = vpack.c.b16 %v386, %v381
      %v437 = vpack.c.b16 %v387, %v382
      %v438 = vpack.c.b16 %v388, %v383
      %v439 = vpack.c.b16 %v394, %v389
      %v440 = vpack.c.b16 %v395, %v390
      %v441 = vpack.c.b16 %v396, %v391
      %v442 = vpack.c.b16 %v397, %v392
      %v443 = vpack.c.b16 %v398, %v393
      %v444 = vpack.c.b16 %v404, %v399
      %v445 = vpack.c.b16 %v405, %v400
      %v446 = vpack.c.b16 %v406, %v401
      %v447 = vpack.c.b16 %v407, %v402
      %v448 = vpack.c.b16 %v408, %v403
      %v449 = vpack.c.b16 %v414, %v409
      %v450 = vpack.c.b16 %v415, %v410
      %v451 = vpack.c.b16 %v416, %v411
      %v452 = vpack.c.b16 %v417, %v412
      %v453 = vpack.c.b16 %v418, %v413
      %v569 = vunpack.c.l.b16 %v221
      %v570 = vunpack.c.h.b16 %v221
      %v571 = vunpack.c.l.b16 %v222
      %v572 = vunpack.c.h.b16 %v222
      %v573 = vunpack.c.l.b16 %v223
      %v574 = vunpack.c.h.b16 %v223
      %v575 = vunpack.c.l.b16 %v224
      %v576 = vunpack.c.h.b16 %v224
      %v577 = vunpack.c.l.b16 %v225
      %v578 = vunpack.c.h.b16 %v225
      %v579 = vunpack.c.l.b16 %v226
      %v580 = vunpack.c.h.b16 %v226
      %v581 = vunpack.c.l.b16 %v227
      %v582 = vunpack.c.h.b16 %v227
      %v583 = vunpack.c.l.b16 %v228
      %v584 = vunpack.c.h.b16 %v228
      %v585 = vunpack.c.l.b16 %v229
      %v586 = vunpack.c.h.b16 %v229
      %v587 = vunpack.c.l.b16 %v230
      %v588 = vunpack.c.h.b16 %v230
      %v589 = vunpack.c.l.b16 %v231
      %v590 = vunpack.c.h.b16 %v231
      %v591 = vunpack.c.l.b16 %v232
      %v592 = vunpack.c.h.b16 %v232
      %v593 = vunpack.c.l.b16 %v233
      %v594 = vunpack.c.h.b16 %v233
      %v595 = vunpack.c.l.b16 %v234
      %v596 = vunpack.c.h.b16 %v234
      %v597 = vunpack.c.l.b16 %v235
      %v598 = vunpack.c.h.b16 %v235
      %v599 = vunpack.c.l.b16 %v236
      %v600 = vunpack.c.h.b16 %v236
      %v601 = vunpack.c.l.b16 %v237
      %v602 = vunpack.c.h.b16 %v237
      %v603 = vunpack.c.l.b16 %v238
      %v604 = vunpack.c.h.b16 %v238
      %v605 = vunpack.c.l.b16 %v239
      %v606 = vunpack.c.h.b16 %v239
      %v607 = vunpack.c.l.b16 %v240
      %v608 = vunpack.c.h.b16 %v240
      %v609 = vunpack.c.l.b16 %v241
      %v610 = vunpack.c.h.b16 %v241
      %v611 = vunpack.c.l.b16 %v242
      %v612 = vunpack.c.h.b16 %v242
      %v613 = vunpack.c.l.b16 %v243
      %v614 = vunpack.c.h.b16 %v243
      %v615 = vunpack.c.l.b16 %v244
      %v616 = vunpack.c.h.b16 %v244
      %v617 = vunpack.c.l.b16 %v245
      %v618 = vunpack.c.h.b16 %v245
      %v619 = vunpack.c.l.b16 %v246
      %v620 = vunpack.c.h.b16 %v246
      %v621 = vunpack.c.l.b16 %v247
      %v622 = vunpack.c.h.b16 %v247
      %v623 = vunpack.c.l.b16 %v248
      %v624 = vunpack.c.h.b16 %v248
      %v625 = vunpack.c.l.b16 %v249
      %v626 = vunpack.c.h.b16 %v249
      %v627 = vunpack.c.l.b16 %v250
      %v628 = vunpack.c.h.b16 %v250
      %v629 = vunpack.c.l.b16 %v251
      %v630 = vunpack.c.h.b16 %v251
      %v631 = vunpack.c.l.b16 %v252
      %v632 = vunpack.c.h.b16 %v252
      %v633 = vunpack.c.l.b16 %v253
      %v634 = vunpack.c.h.b16 %v253
      %v635 = vunpack.c.l.b16 %v254
      %v636 = vunpack.c.h.b16 %v254
      %v637 = vunpack.c.l.b16 %v255
      %v638 = vunpack.c.h.b16 %v255
      %v639 = vunpack.c.l.b16 %v256
      %v640 = vunpack.c.h.b16 %v256
      %v641 = vunpack.c.l.b16 %v257
      %v642 = vunpack.c.h.b16 %v257
      %v643 = vunpack.c.l.b16 %v258
      %v644 = vunpack.c.h.b16 %v258
      %v645 = vunpack.c.l.b16 %v259
      %v646 = vunpack.c.h.b16 %v259
      %v647 = vunpack.c.l.b16 %v260
      %v648 = vunpack.c.h.b16 %v260
      %v649 = vunpack.c.l.b16 %v261
      %v650 = vunpack.c.h.b16 %v261
      %v651 = vunpack.c.l.b16 %v262
      %v652 = vunpack.c.h.b16 %v262
      %v653 = vunpack.c.l.b16 %v263
      %v654 = vunpack.c.h.b16 %v263
      %v655 = vunpack.c.l.b16 %v264
      %v656 = vunpack.c.h.b16 %v264
      %v657 = vunpack.c.l.b16 %v265
      %v658 = vunpack.c.h.b16 %v265
      %v659 = vunpack.c.l.b16 %v266
      %v660 = vunpack.c.h.b16 %v266
      %v661 = vunpack.c.l.b16 %v267
      %v662 = vunpack.c.h.b16 %v267
      %v663 = vunpack.c.l.b16 %v268
      %v664 = vunpack.c.h.b16 %v268
      %v665 = vunpack.c.l.b16 %v269
      %v666 = vunpack.c.h.b16 %v269
      %v667 = vunpack.c.l.b16 %v270
      %v668 = vunpack.c.h.b16 %v270
      %v669 = vunpack.c.l.b16 %v271
      %v670 = vunpack.c.h.b16 %v271
      %v671 = vunpack.c.l.b16 %v272
      %v672 = vunpack.c.h.b16 %v272
      %v673 = vunpack.c.l.b16 %v273
      %v674 = vunpack.c.h.b16 %v273
      %v675 = vunpack.c.l.b16 %v274
      %v676 = vunpack.c.h.b16 %v274
      %v677 = vunpack.c.l.b16 %v275
      %v678 = vunpack.c.h.b16 %v275
      %v679 = vunpack.c.l.b16 %v276
      %v680 = vunpack.c.h.b16 %v276
      %v681 = vunpack.c.l.b16 %v277
      %v682 = vunpack.c.h.b16 %v277
      %v683 = vunpack.c.l.b16 %v278
      %v684 = vunpack.c.h.b16 %v278
      %v685 = vunpack.c.l.b16 %v279
      %v686 = vunpack.c.h.b16 %v279
      %v687 = vunpack.c.l.b16 %v280
      %v688 = vunpack.c.h.b16 %v280
      %v689 = vunpack.c.l.b16 %v281
      %v690 = vunpack.c.h.b16 %v281
      %v691 = vunpack.c.l.b16 %v282
      %v692 = vunpack.c.h.b16 %v282
      %v693 = vunpack.c.l.b16 %v283
      %v694 = vunpack.c.h.b16 %v283
      %v695 = vunpack.c.l.b16 %v284
      %v696 = vunpack.c.h.b16 %v284
      %v697 = vunpack.c.l.b16 %v285
      %v698 = vunpack.c.h.b16 %v285
      %v699 = vunpack.c.l.b16 %v286
      %v700 = vunpack.c.h.b16 %v286
      %v701 = vunpack.c.l.b16 %v287
      %v702 = vunpack.c.h.b16 %v287
      %v703 = vunpack.c.l.b16 %v288
      %v704 = vunpack.c.h.b16 %v288
      %v705 = vunpack.c.l.b16 %v289
      %v706 = vunpack.c.h.b16 %v289
      %v707 = vunpack.c.l.b16 %v290
      %v708 = vunpack.c.h.b16 %v290
      %v709 = vunpack.c.l.b16 %v291
      %v710 = vunpack.c.h.b16 %v291
      %v711 = vunpack.c.l.b16 %v292
      %v712 = vunpack.c.h.b16 %v292
      %v713 = vunpack.c.l.b16 %v293
      %v714 = vunpack.c.h.b16 %v293
      %v715 = vunpack.c.l.b16 %v294
      %v716 = vunpack.c.h.b16 %v294
      %v717 = vunpack.c.l.b16 %v295
      %v718 = vunpack.c.h.b16 %v295
      %v719 = vunpack.c.l.b16 %v296
      %v720 = vunpack.c.h.b16 %v296
      %v721 = vunpack.c.l.b16 %v297
      %v722 = vunpack.c.h.b16 %v297
      %v723 = vunpack.c.l.b16 %v298
      %v724 = vunpack.c.h.b16 %v298
      %v725 = vunpack.c.l.b16 %v299
      %v726 = vunpack.c.h.b16 %v299
      %v727 = vunpack.c.l.b16 %v300
      %v728 = vunpack.c.h.b16 %v300
      %v729 = vpack.c.b16 %v571, %v569
      %v730 = vpack.c.b16 %v572, %v570
      %v731 = vpack.c.b16 %v575, %v573
      %v732 = vpack.c.b16 %v576, %v574
      %v733 = vpack.c.b16 %v579, %v577
      %v734 = vpack.c.b16 %v580, %v578
      %v735 = vpack.c.b16 %v583, %v581
      %v736 = vpack.c.b16 %v584, %v582
      %v737 = vpack.c.b16 %v587, %v585
      %v738 = vpack.c.b16 %v588, %v586
      %v739 = vpack.c.b16 %v591, %v589
      %v740 = vpack.c.b16 %v592, %v590
      %v741 = vpack.c.b16 %v595, %v593
      %v742 = vpack.c.b16 %v596, %v594
      %v743 = vpack.c.b16 %v599, %v597
      %v744 = vpack.c.b16 %v600, %v598
      %v745 = vpack.c.b16 %v603, %v601
      %v746 = vpack.c.b16 %v604, %v602
      %v747 = vpack.c.b16 %v607, %v605
      %v748 = vpack.c.b16 %v608, %v606
      %v749 = vpack.c.b16 %v611, %v609
      %v750 = vpack.c.b16 %v612, %v610
      %v751 = vpack.c.b16 %v615, %v613
      %v752 = vpack.c.b16 %v616, %v614
      %v753 = vpack.c.b16 %v619, %v617
      %v754 = vpack.c.b16 %v620, %v618
      %v755 = vpack.c.b16 %v623, %v621
      %v756 = vpack.c.b16 %v624, %v622
      %v757 = vpack.c.b16 %v627, %v625
      %v758 = vpack.c.b16 %v628, %v626
      %v759 = vpack.c.b16 %v631, %v629
      %v760 = vpack.c.b16 %v632, %v630
      %v761 = vpack.c.b16 %v635, %v633
      %v762 = vpack.c.b16 %v636, %v634
      %v763 = vpack.c.b16 %v639, %v637
      %v764 = vpack.c.b16 %v640, %v638
      %v765 = vpack.c.b16 %v643, %v641
      %v766 = vpack.c.b16 %v644, %v642
      %v767 = vpack.c.b16 %v647, %v645
      %v768 = vpack.c.b16 %v648, %v646
      %v769 = vpack.c.b16 %v651, %v649
      %v770 = vpack.c.b16 %v652, %v650
      %v771 = vpack.c.b16 %v655, %v653
      %v772 = vpack.c.b16 %v656, %v654
      %v773 = vpack.c.b16 %v659, %v657
      %v774 = vpack.c.b16 %v660, %v658
      %v775 = vpack.c.b16 %v663, %v661
      %v776 = vpack.c.b16 %v664, %v662
      %v777 = vpack.c.b16 %v667, %v665
      %v778 = vpack.c.b16 %v668, %v666
      %v779 = vpack.c.b16 %v671, %v669
      %v780 = vpack.c.b16 %v672, %v670
      %v781 = vpack.c.b16 %v675, %v673
      %v782 = vpack.c.b16 %v676, %v674
      %v783 = vpack.c.b16 %v679, %v677
      %v784 = vpack.c.b16 %v680, %v678
      %v785 = vpack.c.b16 %v683, %v681
      %v786 = vpack.c.b16 %v684, %v682
      %v787 = vpack.c.b16 %v687, %v685
      %v788 = vpack.c.b16 %v688, %v686
      %v789 = vpack.c.b16 %v691, %v689
      %v790 = vpack.c.b16 %v692, %v690
      %v791 = vpack.c.b16 %v695, %v693
      %v792 = vpack.c.b16 %v696, %v694
      %v793 = vpack.c.b16 %v699, %v697
      %v794 = vpack.c.b16 %v700, %v698
      %v795 = vpack.c.b16 %v703, %v701
      %v796 = vpack.c.b16 %v704, %v702
      %v797 = vpack.c.b16 %v707, %v705
      %v798 = vpack.c.b16 %v708, %v706
      %v799 = vpack.c.b16 %v711, %v709
      %v800 = vpack.c.b16 %v712, %v710
      %v801 = vpack.c.b16 %v715, %v713
      %v802 = vpack.c.b16 %v716, %v714
      %v803 = vpack.c.b16 %v719, %v717
      %v804 = vpack.c.b16 %v720, %v718
      %v805 = vpack.c.b16 %v723, %v721
      %v806 = vpack.c.b16 %v724, %v722
      %v807 = vpack.c.b16 %v727, %v725
      %v808 = vpack.c.b16 %v728, %v726
      %889 = vmatpush.bf16.msra.mxu0 %v743
      %890 = vmatpush.bf16.msra.mxu0 %v741
      %891 = vmatpush.bf16.msra.mxu0 %v739
      %892 = vmatpush.bf16.msra.mxu0 %v737
      %893 = vmatpush.bf16.msra.mxu0 %v735
      %894 = vmatpush.bf16.msra.mxu0 %v733
      %895 = vmatpush.bf16.msra.mxu0 %v731
      %896 = vmatpush.bf16.msra.mxu0 %v729
      %897 = vmatmul.bf16.gmra.mxu0 %v419
      %v898 = vpop.f32.mrf.mxu0
      %v899 = vadd.f32 %v303, %v898
      %v900 = vpop.f32.mrf.mxu0
      %v901 = vadd.f32 %v303, %v900
      %902 = vmatmul.bf16.gmra.mxu0 %v424
      %v903 = vpop.f32.mrf.mxu0
      %v904 = vadd.f32 %v303, %v903
      %v905 = vpop.f32.mrf.mxu0
      %v906 = vadd.f32 %v303, %v905
      %907 = vmatmul.bf16.gmra.mxu0 %v429
      %v908 = vpop.f32.mrf.mxu0
      %v909 = vadd.f32 %v303, %v908
      %v910 = vpop.f32.mrf.mxu0
      %v911 = vadd.f32 %v303, %v910
      %912 = vmatmul.bf16.gmra.mxu0 %v434
      %v913 = vpop.f32.mrf.mxu0
      %v914 = vadd.f32 %v303, %v913
      %v915 = vpop.f32.mrf.mxu0
      %v916 = vadd.f32 %v303, %v915
      %917 = vmatmul.bf16.gmra.mxu0 %v439
      %v918 = vpop.f32.mrf.mxu0
      %v919 = vadd.f32 %v303, %v918
      %v920 = vpop.f32.mrf.mxu0
      %v921 = vadd.f32 %v303, %v920
      %922 = vmatmul.bf16.gmra.mxu0 %v444
      %v923 = vpop.f32.mrf.mxu0
      %v924 = vadd.f32 %v303, %v923
      %v925 = vpop.f32.mrf.mxu0
      %v926 = vadd.f32 %v303, %v925
      %927 = vmatmul.bf16.gmra.mxu0 %v449
      %v928 = vpop.f32.mrf.mxu0
      %v929 = vadd.f32 %v303, %v928
      %v930 = vpop.f32.mrf.mxu0
      %v931 = vadd.f32 %v303, %v930
      %932 = vdwg.mxu0
      %933 = vmatpush.bf16.msra.mxu0 %v759
      %934 = vmatpush.bf16.msra.mxu0 %v757
      %935 = vmatpush.bf16.msra.mxu0 %v755
      %936 = vmatpush.bf16.msra.mxu0 %v753
      %937 = vmatpush.bf16.msra.mxu0 %v751
      %938 = vmatpush.bf16.msra.mxu0 %v749
      %939 = vmatpush.bf16.msra.mxu0 %v747
      %940 = vmatpush.bf16.msra.mxu0 %v745
      %941 = vmatmul.bf16.gmra.mxu0 %v420
      %v942 = vpop.f32.mrf.mxu0
      %v943 = vadd.f32 %v899, %v942
      %v944 = vpop.f32.mrf.mxu0
      %v945 = vadd.f32 %v901, %v944
      %946 = vmatmul.bf16.gmra.mxu0 %v425
      %v947 = vpop.f32.mrf.mxu0
      %v948 = vadd.f32 %v904, %v947
      %v949 = vpop.f32.mrf.mxu0
      %v950 = vadd.f32 %v906, %v949
      %951 = vmatmul.bf16.gmra.mxu0 %v430
      %v952 = vpop.f32.mrf.mxu0
      %v953 = vadd.f32 %v909, %v952
      %v954 = vpop.f32.mrf.mxu0
      %v955 = vadd.f32 %v911, %v954
      %956 = vmatmul.bf16.gmra.mxu0 %v435
      %v957 = vpop.f32.mrf.mxu0
      %v958 = vadd.f32 %v914, %v957
      %v959 = vpop.f32.mrf.mxu0
      %v960 = vadd.f32 %v916, %v959
      %961 = vmatmul.bf16.gmra.mxu0 %v440
      %v962 = vpop.f32.mrf.mxu0
      %v963 = vadd.f32 %v919, %v962
      %v964 = vpop.f32.mrf.mxu0
      %v965 = vadd.f32 %v921, %v964
      %966 = vmatmul.bf16.gmra.mxu0 %v445
      %v967 = vpop.f32.mrf.mxu0
      %v968 = vadd.f32 %v924, %v967
      %v969 = vpop.f32.mrf.mxu0
      %v970 = vadd.f32 %v926, %v969
      %971 = vmatmul.bf16.gmra.mxu0 %v450
      %v972 = vpop.f32.mrf.mxu0
      %v973 = vadd.f32 %v929, %v972
      %v974 = vpop.f32.mrf.mxu0
      %v975 = vadd.f32 %v931, %v974
      %976 = vdwg.mxu0
      %977 = vmatpush.bf16.msra.mxu0 %v775
      %978 = vmatpush.bf16.msra.mxu0 %v773
      %979 = vmatpush.bf16.msra.mxu0 %v771
      %980 = vmatpush.bf16.msra.mxu0 %v769
      %981 = vmatpush.bf16.msra.mxu0 %v767
      %982 = vmatpush.bf16.msra.mxu0 %v765
      %983 = vmatpush.bf16.msra.mxu0 %v763
      %984 = vmatpush.bf16.msra.mxu0 %v761
      %985 = vmatmul.bf16.gmra.mxu0 %v421
      %v986 = vpop.f32.mrf.mxu0
      %v987 = vadd.f32 %v943, %v986
      %v988 = vpop.f32.mrf.mxu0
      %v989 = vadd.f32 %v945, %v988
      %990 = vmatmul.bf16.gmra.mxu0 %v426
      %v991 = vpop.f32.mrf.mxu0
      %v992 = vadd.f32 %v948, %v991
      %v993 = vpop.f32.mrf.mxu0
      %v994 = vadd.f32 %v950, %v993
      %995 = vmatmul.bf16.gmra.mxu0 %v431
      %v996 = vpop.f32.mrf.mxu0
      %v997 = vadd.f32 %v953, %v996
      %v998 = vpop.f32.mrf.mxu0
      %v999 = vadd.f32 %v955, %v998
      %1000 = vmatmul.bf16.gmra.mxu0 %v436
      %v1001 = vpop.f32.mrf.mxu0
      %v1002 = vadd.f32 %v958, %v1001
      %v1003 = vpop.f32.mrf.mxu0
      %v1004 = vadd.f32 %v960, %v1003
      %1005 = vmatmul.bf16.gmra.mxu0 %v441
      %v1006 = vpop.f32.mrf.mxu0
      %v1007 = vadd.f32 %v963, %v1006
      %v1008 = vpop.f32.mrf.mxu0
      %v1009 = vadd.f32 %v965, %v1008
      %1010 = vmatmul.bf16.gmra.mxu0 %v446
      %v1011 = vpop.f32.mrf.mxu0
      %v1012 = vadd.f32 %v968, %v1011
      %v1013 = vpop.f32.mrf.mxu0
      %v1014 = vadd.f32 %v970, %v1013
      %1015 = vmatmul.bf16.gmra.mxu0 %v451
      %v1016 = vpop.f32.mrf.mxu0
      %v1017 = vadd.f32 %v973, %v1016
      %v1018 = vpop.f32.mrf.mxu0
      %v1019 = vadd.f32 %v975, %v1018
      %1020 = vdwg.mxu0
      %1021 = vmatpush.bf16.msra.mxu0 %v791
      %1022 = vmatpush.bf16.msra.mxu0 %v789
      %1023 = vmatpush.bf16.msra.mxu0 %v787
      %1024 = vmatpush.bf16.msra.mxu0 %v785
      %1025 = vmatpush.bf16.msra.mxu0 %v783
      %1026 = vmatpush.bf16.msra.mxu0 %v781
      %1027 = vmatpush.bf16.msra.mxu0 %v779
      %1028 = vmatpush.bf16.msra.mxu0 %v777
      %1029 = vmatmul.bf16.gmra.mxu0 %v422
      %v1030 = vpop.f32.mrf.mxu0
      %v1031 = vadd.f32 %v987, %v1030
      %v1032 = vpop.f32.mrf.mxu0
      %v1033 = vadd.f32 %v989, %v1032
      %1034 = vmatmul.bf16.gmra.mxu0 %v427
      %v1035 = vpop.f32.mrf.mxu0
      %v1036 = vadd.f32 %v992, %v1035
      %v1037 = vpop.f32.mrf.mxu0
      %v1038 = vadd.f32 %v994, %v1037
      %1039 = vmatmul.bf16.gmra.mxu0 %v432
      %v1040 = vpop.f32.mrf.mxu0
      %v1041 = vadd.f32 %v997, %v1040
      %v1042 = vpop.f32.mrf.mxu0
      %v1043 = vadd.f32 %v999, %v1042
      %1044 = vmatmul.bf16.gmra.mxu0 %v437
      %v1045 = vpop.f32.mrf.mxu0
      %v1046 = vadd.f32 %v1002, %v1045
      %v1047 = vpop.f32.mrf.mxu0
      %v1048 = vadd.f32 %v1004, %v1047
      %1049 = vmatmul.bf16.gmra.mxu0 %v442
      %v1050 = vpop.f32.mrf.mxu0
      %v1051 = vadd.f32 %v1007, %v1050
      %v1052 = vpop.f32.mrf.mxu0
      %v1053 = vadd.f32 %v1009, %v1052
      %1054 = vmatmul.bf16.gmra.mxu0 %v447
      %v1055 = vpop.f32.mrf.mxu0
      %v1056 = vadd.f32 %v1012, %v1055
      %v1057 = vpop.f32.mrf.mxu0
      %v1058 = vadd.f32 %v1014, %v1057
      %1059 = vmatmul.bf16.gmra.mxu0 %v452
      %v1060 = vpop.f32.mrf.mxu0
      %v1061 = vadd.f32 %v1017, %v1060
      %v1062 = vpop.f32.mrf.mxu0
      %v1063 = vadd.f32 %v1019, %v1062
      %1064 = vdwg.mxu0
      %1065 = vmatpush.bf16.msra.mxu0 %v807
      %1066 = vmatpush.bf16.msra.mxu0 %v805
      %1067 = vmatpush.bf16.msra.mxu0 %v803
      %1068 = vmatpush.bf16.msra.mxu0 %v801
      %1069 = vmatpush.bf16.msra.mxu0 %v799
      %1070 = vmatpush.bf16.msra.mxu0 %v797
      %1071 = vmatpush.bf16.msra.mxu0 %v795
      %1072 = vmatpush.bf16.msra.mxu0 %v793
      %1073 = vmatmul.bf16.gmra.mxu0 %v423
      %v1074 = vpop.f32.mrf.mxu0
      %v1075 = vadd.f32 %v1031, %v1074
      %v1076 = vpop.f32.mrf.mxu0
      %v1077 = vadd.f32 %v1033, %v1076
      %1078 = vmatmul.bf16.gmra.mxu0 %v428
      %v1079 = vpop.f32.mrf.mxu0
      %v1080 = vadd.f32 %v1036, %v1079
      %v1081 = vpop.f32.mrf.mxu0
      %v1082 = vadd.f32 %v1038, %v1081
      %1083 = vmatmul.bf16.gmra.mxu0 %v433
      %v1084 = vpop.f32.mrf.mxu0
      %v1085 = vadd.f32 %v1041, %v1084
      %v1086 = vpop.f32.mrf.mxu0
      %v1087 = vadd.f32 %v1043, %v1086
      %1088 = vmatmul.bf16.gmra.mxu0 %v438
      %v1089 = vpop.f32.mrf.mxu0
      %v1090 = vadd.f32 %v1046, %v1089
      %v1091 = vpop.f32.mrf.mxu0
      %v1092 = vadd.f32 %v1048, %v1091
      %1093 = vmatmul.bf16.gmra.mxu0 %v443
      %v1094 = vpop.f32.mrf.mxu0
      %v1095 = vadd.f32 %v1051, %v1094
      %v1096 = vpop.f32.mrf.mxu0
      %v1097 = vadd.f32 %v1053, %v1096
      %1098 = vmatmul.bf16.gmra.mxu0 %v448
      %v1099 = vpop.f32.mrf.mxu0
      %v1100 = vadd.f32 %v1056, %v1099
      %v1101 = vpop.f32.mrf.mxu0
      %v1102 = vadd.f32 %v1058, %v1101
      %1103 = vmatmul.bf16.gmra.mxu0 %v453
      %v1104 = vpop.f32.mrf.mxu0
      %v1105 = vadd.f32 %v1061, %v1104
      %v1106 = vpop.f32.mrf.mxu0
      %v1107 = vadd.f32 %v1063, %v1106
      %1108 = vdwg.mxu0
      %1109 = vmatpush.bf16.msra.mxu0 %v744
      %1110 = vmatpush.bf16.msra.mxu0 %v742
      %1111 = vmatpush.bf16.msra.mxu0 %v740
      %1112 = vmatpush.bf16.msra.mxu0 %v738
      %1113 = vmatpush.bf16.msra.mxu0 %v736
      %1114 = vmatpush.bf16.msra.mxu0 %v734
      %1115 = vmatpush.bf16.msra.mxu0 %v732
      %1116 = vmatpush.bf16.msra.mxu0 %v730
      %1117 = vmatmul.bf16.gmra.mxu0 %v419
      %v1118 = vpop.f32.mrf.mxu0
      %v1119 = vadd.f32 %v304, %v1118
      %v1120 = vpop.f32.mrf.mxu0
      %v1121 = vadd.f32 %v304, %v1120
      %1122 = vmatmul.bf16.gmra.mxu0 %v424
      %v1123 = vpop.f32.mrf.mxu0
      %v1124 = vadd.f32 %v304, %v1123
      %v1125 = vpop.f32.mrf.mxu0
      %v1126 = vadd.f32 %v304, %v1125
      %1127 = vmatmul.bf16.gmra.mxu0 %v429
      %v1128 = vpop.f32.mrf.mxu0
      %v1129 = vadd.f32 %v304, %v1128
      %v1130 = vpop.f32.mrf.mxu0
      %v1131 = vadd.f32 %v304, %v1130
      %1132 = vmatmul.bf16.gmra.mxu0 %v434
      %v1133 = vpop.f32.mrf.mxu0
      %v1134 = vadd.f32 %v304, %v1133
      %v1135 = vpop.f32.mrf.mxu0
      %v1136 = vadd.f32 %v304, %v1135
      %1137 = vmatmul.bf16.gmra.mxu0 %v439
      %v1138 = vpop.f32.mrf.mxu0
      %v1139 = vadd.f32 %v304, %v1138
      %v1140 = vpop.f32.mrf.mxu0
      %v1141 = vadd.f32 %v304, %v1140
      %1142 = vmatmul.bf16.gmra.mxu0 %v444
      %v1143 = vpop.f32.mrf.mxu0
      %v1144 = vadd.f32 %v304, %v1143
      %v1145 = vpop.f32.mrf.mxu0
      %v1146 = vadd.f32 %v304, %v1145
      %1147 = vmatmul.bf16.gmra.mxu0 %v449
      %v1148 = vpop.f32.mrf.mxu0
      %v1149 = vadd.f32 %v304, %v1148
      %v1150 = vpop.f32.mrf.mxu0
      %v1151 = vadd.f32 %v304, %v1150
      %1152 = vdwg.mxu0
      %1153 = vmatpush.bf16.msra.mxu0 %v760
      %1154 = vmatpush.bf16.msra.mxu0 %v758
      %1155 = vmatpush.bf16.msra.mxu0 %v756
      %1156 = vmatpush.bf16.msra.mxu0 %v754
      %1157 = vmatpush.bf16.msra.mxu0 %v752
      %1158 = vmatpush.bf16.msra.mxu0 %v750
      %1159 = vmatpush.bf16.msra.mxu0 %v748
      %1160 = vmatpush.bf16.msra.mxu0 %v746
      %1161 = vmatmul.bf16.gmra.mxu0 %v420
      %v1162 = vpop.f32.mrf.mxu0
      %v1163 = vadd.f32 %v1119, %v1162
      %v1164 = vpop.f32.mrf.mxu0
      %v1165 = vadd.f32 %v1121, %v1164
      %1166 = vmatmul.bf16.gmra.mxu0 %v425
      %v1167 = vpop.f32.mrf.mxu0
      %v1168 = vadd.f32 %v1124, %v1167
      %v1169 = vpop.f32.mrf.mxu0
      %v1170 = vadd.f32 %v1126, %v1169
      %1171 = vmatmul.bf16.gmra.mxu0 %v430
      %v1172 = vpop.f32.mrf.mxu0
      %v1173 = vadd.f32 %v1129, %v1172
      %v1174 = vpop.f32.mrf.mxu0
      %v1175 = vadd.f32 %v1131, %v1174
      %1176 = vmatmul.bf16.gmra.mxu0 %v435
      %v1177 = vpop.f32.mrf.mxu0
      %v1178 = vadd.f32 %v1134, %v1177
      %v1179 = vpop.f32.mrf.mxu0
      %v1180 = vadd.f32 %v1136, %v1179
      %1181 = vmatmul.bf16.gmra.mxu0 %v440
      %v1182 = vpop.f32.mrf.mxu0
      %v1183 = vadd.f32 %v1139, %v1182
      %v1184 = vpop.f32.mrf.mxu0
      %v1185 = vadd.f32 %v1141, %v1184
      %1186 = vmatmul.bf16.gmra.mxu0 %v445
      %v1187 = vpop.f32.mrf.mxu0
      %v1188 = vadd.f32 %v1144, %v1187
      %v1189 = vpop.f32.mrf.mxu0
      %v1190 = vadd.f32 %v1146, %v1189
      %1191 = vmatmul.bf16.gmra.mxu0 %v450
      %v1192 = vpop.f32.mrf.mxu0
      %v1193 = vadd.f32 %v1149, %v1192
      %v1194 = vpop.f32.mrf.mxu0
      %v1195 = vadd.f32 %v1151, %v1194
      %1196 = vdwg.mxu0
      %1197 = vmatpush.bf16.msra.mxu0 %v776
      %1198 = vmatpush.bf16.msra.mxu0 %v774
      %1199 = vmatpush.bf16.msra.mxu0 %v772
      %1200 = vmatpush.bf16.msra.mxu0 %v770
      %1201 = vmatpush.bf16.msra.mxu0 %v768
      %1202 = vmatpush.bf16.msra.mxu0 %v766
      %1203 = vmatpush.bf16.msra.mxu0 %v764
      %1204 = vmatpush.bf16.msra.mxu0 %v762
      %1205 = vmatmul.bf16.gmra.mxu0 %v421
      %v1206 = vpop.f32.mrf.mxu0
      %v1207 = vadd.f32 %v1163, %v1206
      %v1208 = vpop.f32.mrf.mxu0
      %v1209 = vadd.f32 %v1165, %v1208
      %1210 = vmatmul.bf16.gmra.mxu0 %v426
      %v1211 = vpop.f32.mrf.mxu0
      %v1212 = vadd.f32 %v1168, %v1211
      %v1213 = vpop.f32.mrf.mxu0
      %v1214 = vadd.f32 %v1170, %v1213
      %1215 = vmatmul.bf16.gmra.mxu0 %v431
      %v1216 = vpop.f32.mrf.mxu0
      %v1217 = vadd.f32 %v1173, %v1216
      %v1218 = vpop.f32.mrf.mxu0
      %v1219 = vadd.f32 %v1175, %v1218
      %1220 = vmatmul.bf16.gmra.mxu0 %v436
      %v1221 = vpop.f32.mrf.mxu0
      %v1222 = vadd.f32 %v1178, %v1221
      %v1223 = vpop.f32.mrf.mxu0
      %v1224 = vadd.f32 %v1180, %v1223
      %1225 = vmatmul.bf16.gmra.mxu0 %v441
      %v1226 = vpop.f32.mrf.mxu0
      %v1227 = vadd.f32 %v1183, %v1226
      %v1228 = vpop.f32.mrf.mxu0
      %v1229 = vadd.f32 %v1185, %v1228
      %1230 = vmatmul.bf16.gmra.mxu0 %v446
      %v1231 = vpop.f32.mrf.mxu0
      %v1232 = vadd.f32 %v1188, %v1231
      %v1233 = vpop.f32.mrf.mxu0
      %v1234 = vadd.f32 %v1190, %v1233
      %1235 = vmatmul.bf16.gmra.mxu0 %v451
      %v1236 = vpop.f32.mrf.mxu0
      %v1237 = vadd.f32 %v1193, %v1236
      %v1238 = vpop.f32.mrf.mxu0
      %v1239 = vadd.f32 %v1195, %v1238
      %1240 = vdwg.mxu0
      %1241 = vmatpush.bf16.msra.mxu0 %v792
      %1242 = vmatpush.bf16.msra.mxu0 %v790
      %1243 = vmatpush.bf16.msra.mxu0 %v788
      %1244 = vmatpush.bf16.msra.mxu0 %v786
      %1245 = vmatpush.bf16.msra.mxu0 %v784
      %1246 = vmatpush.bf16.msra.mxu0 %v782
      %1247 = vmatpush.bf16.msra.mxu0 %v780
      %1248 = vmatpush.bf16.msra.mxu0 %v778
      %1249 = vmatmul.bf16.gmra.mxu0 %v422
      %v1250 = vpop.f32.mrf.mxu0
      %v1251 = vadd.f32 %v1207, %v1250
      %v1252 = vpop.f32.mrf.mxu0
      %v1253 = vadd.f32 %v1209, %v1252
      %1254 = vmatmul.bf16.gmra.mxu0 %v427
      %v1255 = vpop.f32.mrf.mxu0
      %v1256 = vadd.f32 %v1212, %v1255
      %v1257 = vpop.f32.mrf.mxu0
      %v1258 = vadd.f32 %v1214, %v1257
      %1259 = vmatmul.bf16.gmra.mxu0 %v432
      %v1260 = vpop.f32.mrf.mxu0
      %v1261 = vadd.f32 %v1217, %v1260
      %v1262 = vpop.f32.mrf.mxu0
      %v1263 = vadd.f32 %v1219, %v1262
      %1264 = vmatmul.bf16.gmra.mxu0 %v437
      %v1265 = vpop.f32.mrf.mxu0
      %v1266 = vadd.f32 %v1222, %v1265
      %v1267 = vpop.f32.mrf.mxu0
      %v1268 = vadd.f32 %v1224, %v1267
      %1269 = vmatmul.bf16.gmra.mxu0 %v442
      %v1270 = vpop.f32.mrf.mxu0
      %v1271 = vadd.f32 %v1227, %v1270
      %v1272 = vpop.f32.mrf.mxu0
      %v1273 = vadd.f32 %v1229, %v1272
      %1274 = vmatmul.bf16.gmra.mxu0 %v447
      %v1275 = vpop.f32.mrf.mxu0
      %v1276 = vadd.f32 %v1232, %v1275
      %v1277 = vpop.f32.mrf.mxu0
      %v1278 = vadd.f32 %v1234, %v1277
      %1279 = vmatmul.bf16.gmra.mxu0 %v452
      %v1280 = vpop.f32.mrf.mxu0
      %v1281 = vadd.f32 %v1237, %v1280
      %v1282 = vpop.f32.mrf.mxu0
      %v1283 = vadd.f32 %v1239, %v1282
      %1284 = vdwg.mxu0
      %1285 = vmatpush.bf16.msra.mxu0 %v808
      %1286 = vmatpush.bf16.msra.mxu0 %v806
      %1287 = vmatpush.bf16.msra.mxu0 %v804
      %1288 = vmatpush.bf16.msra.mxu0 %v802
      %1289 = vmatpush.bf16.msra.mxu0 %v800
      %1290 = vmatpush.bf16.msra.mxu0 %v798
      %1291 = vmatpush.bf16.msra.mxu0 %v796
      %1292 = vmatpush.bf16.msra.mxu0 %v794
      %1293 = vmatmul.bf16.gmra.mxu0 %v423
      %v1294 = vpop.f32.mrf.mxu0
      %v1295 = vadd.f32 %v1251, %v1294
      %v1296 = vpop.f32.mrf.mxu0
      %v1297 = vadd.f32 %v1253, %v1296
      %1298 = vmatmul.bf16.gmra.mxu0 %v428
      %v1299 = vpop.f32.mrf.mxu0
      %v1300 = vadd.f32 %v1256, %v1299
      %v1301 = vpop.f32.mrf.mxu0
      %v1302 = vadd.f32 %v1258, %v1301
      %1303 = vmatmul.bf16.gmra.mxu0 %v433
      %v1304 = vpop.f32.mrf.mxu0
      %v1305 = vadd.f32 %v1261, %v1304
      %v1306 = vpop.f32.mrf.mxu0
      %v1307 = vadd.f32 %v1263, %v1306
      %1308 = vmatmul.bf16.gmra.mxu0 %v438
      %v1309 = vpop.f32.mrf.mxu0
      %v1310 = vadd.f32 %v1266, %v1309
      %v1311 = vpop.f32.mrf.mxu0
      %v1312 = vadd.f32 %v1268, %v1311
      %1313 = vmatmul.bf16.gmra.mxu0 %v443
      %v1314 = vpop.f32.mrf.mxu0
      %v1315 = vadd.f32 %v1271, %v1314
      %v1316 = vpop.f32.mrf.mxu0
      %v1317 = vadd.f32 %v1273, %v1316
      %1318 = vmatmul.bf16.gmra.mxu0 %v448
      %v1319 = vpop.f32.mrf.mxu0
      %v1320 = vadd.f32 %v1276, %v1319
      %v1321 = vpop.f32.mrf.mxu0
      %v1322 = vadd.f32 %v1278, %v1321
      %1323 = vmatmul.bf16.gmra.mxu0 %v453
      %v1324 = vpop.f32.mrf.mxu0
      %v1325 = vadd.f32 %v1281, %v1324
      %v1326 = vpop.f32.mrf.mxu0
      %v1327 = vadd.f32 %v1283, %v1326
      %1328 = vdwg.mxu0
      %v1329 = vtanh.pop %v1075
      %v1330 = vtanh.pop %v1295
      %v1331 = vtanh.pop %v1077
      %v1332 = vtanh.pop %v1297
      %v1333 = vtanh.pop %v1080
      %v1334 = vtanh.pop %v1300
      %v1335 = vtanh.pop %v1082
      %v1336 = vtanh.pop %v1302
      %v1337 = vtanh.pop %v1085
      %v1338 = vtanh.pop %v1305
      %v1339 = vtanh.pop %v1087
      %v1340 = vtanh.pop %v1307
      %v1341 = vtanh.pop %v1090
      %v1342 = vtanh.pop %v1310
      %v1343 = vtanh.pop %v1092
      %v1344 = vtanh.pop %v1312
      %v1345 = vtanh.pop %v1095
      %v1346 = vtanh.pop %v1315
      %v1347 = vtanh.pop %v1097
      %v1348 = vtanh.pop %v1317
      %v1349 = vtanh.pop %v1100
      %v1350 = vtanh.pop %v1320
      %v1351 = vtanh.pop %v1102
      %v1352 = vtanh.pop %v1322
      %v1353 = vtanh.pop %v1105
      %v1354 = vtanh.pop %v1325
      %v1355 = vtanh.pop %v1107
      %v1356 = vtanh.pop %v1327
      %v1357 = vmul.f32 %v1329, %v1329
      %v1358 = vmul.f32 %v1330, %v1330
      %v1359 = vmul.f32 %v1331, %v1331
      %v1360 = vmul.f32 %v1332, %v1332
      %v1361 = vmul.f32 %v1333, %v1333
      %v1362 = vmul.f32 %v1334, %v1334
      %v1363 = vmul.f32 %v1335, %v1335
      %v1364 = vmul.f32 %v1336, %v1336
      %v1365 = vmul.f32 %v1337, %v1337
      %v1366 = vmul.f32 %v1338, %v1338
      %v1367 = vmul.f32 %v1339, %v1339
      %v1368 = vmul.f32 %v1340, %v1340
      %v1369 = vmul.f32 %v1341, %v1341
      %v1370 = vmul.f32 %v1342, %v1342
      %v1371 = vmul.f32 %v1343, %v1343
      %v1372 = vmul.f32 %v1344, %v1344
      %v1373 = vmul.f32 %v1345, %v1345
      %v1374 = vmul.f32 %v1346, %v1346
      %v1375 = vmul.f32 %v1347, %v1347
      %v1376 = vmul.f32 %v1348, %v1348
      %v1377 = vmul.f32 %v1349, %v1349
      %v1378 = vmul.f32 %v1350, %v1350
      %v1379 = vmul.f32 %v1351, %v1351
      %v1380 = vmul.f32 %v1352, %v1352
      %v1381 = vmul.f32 %v1353, %v1353
      %v1382 = vmul.f32 %v1354, %v1354
      %v1383 = vmul.f32 %v1355, %v1355
      %v1384 = vmul.f32 %v1356, %v1356
      %1385 = vst [vmem:[%s177] sm:$0xff] %v1357
      %1386 = vst [vmem:[%s177 + $0x8] sm:$0xff] %v1358
      %1387 = vst [vmem:[%s177 + $0x10] sm:$0xff] %v1359
      %1388 = vst [vmem:[%s177 + $0x18] sm:$0xff] %v1360
      %1389 = vst [vmem:[%s177 + $0x20] sm:$0xff] %v1361
      %1390 = vst [vmem:[%s177 + $0x28] sm:$0xff] %v1362
      %1391 = vst [vmem:[%s177 + $0x30] sm:$0xff] %v1363
      %1392 = vst [vmem:[%s177 + $0x38] sm:$0xff] %v1364
      %1393 = vst [vmem:[%s177 + $0x40] sm:$0xff] %v1365
      %1394 = vst [vmem:[%s177 + $0x48] sm:$0xff] %v1366
      %1395 = vst [vmem:[%s177 + $0x50] sm:$0xff] %v1367
      %1396 = vst [vmem:[%s177 + $0x58] sm:$0xff] %v1368
      %1397 = vst [vmem:[%s177 + $0x60] sm:$0xff] %v1369
      %1398 = vst [vmem:[%s177 + $0x68] sm:$0xff] %v1370
      %1399 = vst [vmem:[%s177 + $0x70] sm:$0xff] %v1371
      %1400 = vst [vmem:[%s177 + $0x78] sm:$0xff] %v1372
      %1401 = vst [vmem:[%s177 + $0x80] sm:$0xff] %v1373
      %1402 = vst [vmem:[%s177 + $0x88] sm:$0xff] %v1374
      %1403 = vst [vmem:[%s177 + $0x90] sm:$0xff] %v1375
      %1404 = vst [vmem:[%s177 + $0x98] sm:$0xff] %v1376
      %1405 = vst [vmem:[%s177 + $0xa0] sm:$0xff] %v1377
      %1406 = vst [vmem:[%s177 + $0xa8] sm:$0xff] %v1378
      %1407 = vst [vmem:[%s177 + $0xb0] sm:$0xff] %v1379
      %1408 = vst [vmem:[%s177 + $0xb8] sm:$0xff] %v1380
      %1409 = vst [vmem:[%s177 + $0xc0] sm:$0xff] %v1381
      %1410 = vst [vmem:[%s177 + $0xc8] sm:$0xff] %v1382
      %1411 = vst [vmem:[%s177 + $0xd0] sm:$0xff] %v1383
      %1412 = vst [vmem:[%s177 + $0xd8] sm:$0xff] %v1384
      %s1413 = smul.u32 14, %s14
      %p1414 = scmp.lt.s32.totalorder %s1413, 27
      %s1415 = scalar_select %p1414, %s1413, 27
      %s1416 = smul.addr %s1415, 2
      %s1417 = smul.addr %s1416, 8
      %s1418 = scalar_lea.vmem %s3, %s1417
      // Predicated region
      $region33: #{conv_transpose_tanh_sq.1} parent=31 // pred_check
        %p1419 = pneg %p100
      $region34: #{conv_transpose_tanh_sq.1} parent=31 // pred_check_branch
        %1421 = sbr.rel (%p1419) target = $region36
      $region35: #{conv_transpose_tanh_sq.1} parent=31 // pred_region
        %s1422 = smul.u32 14, %s14
      $region36: #{conv_transpose_tanh_sq.1} parent=31 // pred_fallthru
        _
    $region32: #{conv_transpose_tanh_sq.1} parent=5 // pred_fallthru
      _
    %p1423 = scmp.le.s32.totalorder 2, %s9
    // Predicated region
    $region37: #{conv_transpose_tanh_sq.1} parent=5 // pred_check
      %p1424 = pneg %p1423
    $region38: #{conv_transpose_tanh_sq.1} parent=5 // pred_check_branch
      %1426 = sbr.rel (%p1424) target = $region40
    $region39: #{conv_transpose_tanh_sq.1} parent=5 // pred_region
      %s1427 = ssub.s32 %s9, 2
      // Predicated region
      $region41: #{conv_transpose_tanh_sq.1} parent=39 // pred_check
        %p1428 = pneg %p106
      $region42: #{conv_transpose_tanh_sq.1} parent=39 // pred_check_branch
        %1430 = sbr.rel (%p1428) target = $region44
      $region43: #{conv_transpose_tanh_sq.1} parent=39 // pred_region
        %s1431 = smul.u32 14, %s15
        %p1432 = scmp.lt.s32.totalorder %s1431, 27
        %s1433 = scalar_select %p1432, %s1431, 27
        %s1434 = smul.addr %s1433, 2
        %s1435 = smul.addr %s1434, 8
        %s1436 = scalar_lea.vmem %s3, %s1435
      $region44: #{conv_transpose_tanh_sq.1} parent=39 // pred_fallthru
        _
    $region40: #{conv_transpose_tanh_sq.1} parent=5 // pred_fallthru
      _
  $region6: #{conv_transpose_tanh_sq.1} parent=0 // loop_footer
    %s13 = sadd.s32 1, %s9
  $region7: #{conv_transpose_tanh_sq.1} parent=0 // loop_footer_branch
    %8 = sbr.rel target = $region3
  $region8: #{conv_transpose_tanh_sq.1} parent=0 // loop_exit
    _

</llo_original>
